<compile_context>
chip_gen: v7x
topology: tpu7x:2x2x1
jax: 0.10.0
libtpu: 0.0.40
codegen_flags: <defaults>
</compile_context>

<pallas_src>
import math
import functools

import jax
import jax.numpy as jnp
import numpy as np
from jax import lax
from jax.experimental import pallas as pl
from jax.experimental.pallas import tpu as pltpu

# ---------------- config (small, consistent with the module) ----------------
VOCAB = 64
CONTEXT = 16
D_EMBED = 32
N_HEAD = 2
N_LAYER = 2
D_FF = 64
USE_FF = True
EPS = 1e-5  # torch.nn.LayerNorm default


# ------------------------------ kernel helpers -------------------------------
def _ln(x, w_row):
    # LayerNorm(bias=False): (x - mean) / sqrt(var + eps) * weight
    mu = jnp.mean(x, axis=-1, keepdims=True)
    var = jnp.mean((x - mu) ** 2, axis=-1, keepdims=True)
    return (x - mu) * lax.rsqrt(var + EPS) * w_row


def _erf(x):
    # Abramowitz & Stegun 7.1.26 polynomial, |err| <= 1.5e-7.  Uses only
    # exp / mul / add / where, so it is guaranteed to lower on Mosaic and
    # matches the exact-erf (torch nn.GELU default) reference to fp noise.
    p_c = 0.3275911
    a1, a2, a3, a4, a5 = (0.254829592, -0.284496736, 1.421413741,
                          -1.453152027, 1.061405429)
    ax = jnp.abs(x)
    t = 1.0 / (1.0 + p_c * ax)
    poly = ((((a5 * t + a4) * t + a3) * t + a2) * t + a1) * t
    y = 1.0 - poly * jnp.exp(-(ax * ax))
    return jnp.where(x >= 0, y, -y)


def _gelu_exact(x):
    return 0.5 * x * (1.0 + _erf(x * (1.0 / math.sqrt(2.0))))


# ---------------------------- Pallas kernel ---------------------------------
def causal_gdm_kernel(e_ref, p_ref, ln_ref, w32_ref, w64_ref, out_ref,
                      *, batch, seq):
    """Last-layer, last-query-position forward.  All refs fully VMEM-resident.

    e_ref  : (B*S, d)  token embeddings, batch-major rows
    p_ref  : (S+1, d)  positional embeddings (shared across batch)
    ln_ref : (4, d)    rows = [ln_e, ln_p, ln_mlp, ln_f] (last layer)
    w32_ref: (d+d_ff, d)   rows = [W_o folded (d,d) ; W_proj^T (d_ff,d)]
    w64_ref: (2d, 64)      rows = [W_fc^T (d,d_ff) ; lm_head^T (d,vocab)]
    out_ref: (1, B*vocab)  lane-packed logits row
    """
    B, S = batch, seq
    d = D_EMBED
    scale = 1.0 / math.sqrt(d)

    ln_e_w = ln_ref[0:1, :]
    ln_p_w = ln_ref[1:2, :]
    ln_mlp_w = ln_ref[2:3, :]
    ln_f_w = ln_ref[3:4, :]

    w_o = w32_ref[0:d, :]              # (d, d)     heads pre-folded + transposed
    w_proj = w32_ref[d:d + D_FF, :]    # (d_ff, d)
    w_fc = w64_ref[0:d, :]             # (d, d_ff)
    lm_head = w64_ref[d:2 * d, :]      # (d, vocab)

    e_ln = _ln(e_ref[...], ln_e_w)     # (B*S, d)  values for every position
    p_ln = _ln(p_ref[...], ln_p_w)     # (S+1, d)

    # ---- attention for the LAST query row only (batch-invariant) ----
    # Query row S-1 of the sliced score matrix uses p[S]; the appended mask row
    # makes every key visible, so no causal masking is needed here.
    q = p_ln[S:S + 1, :]                               # (1, d)
    k = p_ln[:S, :]                                    # (S, d)
    s = lax.dot_general(q, k, (((1,), (1,)), ((), ())),
                        preferred_element_type=jnp.float32) * scale   # (1, S)
    s = jnp.clip(s, -10.0, 10.0)
    # NOTE: no row-max subtraction; safe ONLY because of the +/-10 clip above.
    pexp = jnp.exp(s)
    denom = jnp.sum(pexp, axis=-1, keepdims=True)
    # Exact divide (no approx reciprocal); fold W_N's last diagonal entry 1/S.
    attn_wn = pexp / (denom * float(S))                # (1, S)

    # ---- apply attention to all batches with ONE matmul ----
    # Build a block-structured (B, B*S) matrix: row b carries attn_wn in columns
    # [b*S, (b+1)*S) and zeros elsewhere, then hit the flattened value slab.
    attn_rep = jnp.concatenate([attn_wn] * B, axis=1)            # (1, B*S)
    row = lax.broadcasted_iota(jnp.int32, (B, B * S), 0)
    col = lax.broadcasted_iota(jnp.int32, (B, B * S), 1)
    in_blk = (col >= row * S) & (col < (row + 1) * S)
    attn_blk = jnp.where(in_blk, attn_rep, 0.0)                  # (B, B*S)

    y = jnp.dot(attn_blk, e_ln, preferred_element_type=jnp.float32)   # (B, d)
    # Heads are identical, so the head concat + W_o collapses to one (d,d) matmul.
    x = jnp.dot(y, w_o, preferred_element_type=jnp.float32)           # (B, d)

    if USE_FF:
        xn = _ln(x, ln_mlp_w)
        h = _gelu_exact(jnp.dot(xn, w_fc, preferred_element_type=jnp.float32))
        x = x + jnp.dot(h, w_proj, preferred_element_type=jnp.float32)

    xf = _ln(x, ln_f_w)                                                # (B, d)
    logits = jnp.dot(xf, lm_head, preferred_element_type=jnp.float32)  # (B, vocab)

    # Lane-pack the B logit rows into a single (1, B*vocab) = (1, 128) store.
    out_ref[...] = jnp.concatenate([logits[b:b + 1, :] for b in range(B)], axis=1)


# ------------------------------- wrapper -------------------------------------
def prepare_weights(params):
    """One-time weight preparation (hoisted out of the per-call path).

    Only the LAST layer's weights are needed: the module overwrites x each
    block (`x = block(e, p)`), so earlier layers never reach the output.
    """
    L = N_LAYER - 1
    d = D_EMBED
    # fold the identical-head replication into W_o: sum per-head blocks of W_o^T
    w_o_f = params["w_o"][L].T.reshape(N_HEAD, d, d).sum(axis=0)     # (d, d)
    w_proj_t = params["w_proj"][L].T                                  # (d_ff, d)
    w_fc_t = params["w_fc"][L].T                                      # (d, d_ff)
    lm_head_t = params["lm_head"].T                                   # (d, vocab)

    ln_pack = jnp.stack([params["ln_e"][L], params["ln_p"][L],
                         params["ln_mlp"][L], params["ln_f"]],
                        axis=0).astype(jnp.float32)                   # (4, d)
    w32 = jnp.concatenate([w_o_f, w_proj_t], axis=0).astype(jnp.float32)   # (96, 32)
    w64 = jnp.concatenate([w_fc_t, lm_head_t], axis=0).astype(jnp.float32) # (64, 64)

    return {"wte": params["wte"].astype(jnp.float32),
            "wpe": params["wpe"].astype(jnp.float32),
            "ln": ln_pack, "w32": w32, "w64": w64}


@jax.jit
def causal_gdm_forward(idx, prep):
    """targets=None path: returns logits of shape (B, 1, vocab)."""
    B, S = idx.shape
    assert S <= CONTEXT
    # glue: embedding gather stays in plain JAX (data-dependent row gather).
    e = prep["wte"][idx].reshape(B * S, D_EMBED)    # (B*S, d) batch-major rows
    p = prep["wpe"][:S + 1]                         # (S+1, d) shared across batch

    vmem = pl.BlockSpec(memory_space=pltpu.MemorySpace.VMEM)
    logits_row = pl.pallas_call(
        functools.partial(causal_gdm_kernel, batch=B, seq=S),
        out_shape=jax.ShapeDtypeStruct((1, B * VOCAB), jnp.float32),
        in_specs=[vmem, vmem, vmem, vmem, vmem],
        out_specs=vmem,
        # single invocation: no grid, everything fully VMEM-resident
    )(e, p, prep["ln"], prep["w32"], prep["w64"])

    return logits_row.reshape(B, 1, VOCAB)


# --------------------------- pure-JAX reference ------------------------------
def _ln_ref(x, w):
    mu = x.mean(-1, keepdims=True)
    var = ((x - mu) ** 2).mean(-1, keepdims=True)
    return (x - mu) / jnp.sqrt(var + EPS) * w


def reference_forward(idx, params):
    """Faithful translation of the PyTorch module (all layers, all positions)."""
    B, S = idx.shape
    e0 = params["wte"][idx]
    p0 = jnp.tile(params["wpe"][:S + 1][None], (B, 1, 1))
    x = None
    for l in range(N_LAYER):
        e = _ln_ref(e0, params["ln_e"][l])
        p = _ln_ref(p0, params["ln_p"][l])
        Q = jnp.broadcast_to(p[:, None], (B, N_HEAD, S + 1, D_EMBED))
        K = jnp.broadcast_to(p[:, None, :S], (B, N_HEAD, S, D_EMBED))
        V = jnp.broadcast_to(e[:, None], (B, N_HEAD, S, D_EMBED))
        mask = jnp.tril(jnp.ones((S, S)), k=-1)
        mask = jnp.concatenate([mask, jnp.ones((1, S))], axis=0)[None, None]
        s = jnp.einsum("bhqd,bhkd->bhqk", Q, K) / math.sqrt(D_EMBED)
        s = jnp.clip(s, -10.0, 10.0)
        s = jnp.where(mask.astype(bool), s, -jnp.inf)
        s = s[:, :, 1:, :]
        a = jax.nn.softmax(s, axis=-1)
        y = jnp.einsum("bhqk,bhkd->bhqd", a, V)
        wn = jnp.diag(1.0 / (jnp.arange(CONTEXT, dtype=jnp.float32) + 1.0))[:S, :S]
        y = jnp.einsum("qk,bhkd->bhqd", wn, y)
        y = jnp.transpose(y, (0, 2, 1, 3)).reshape(B, S, N_HEAD * D_EMBED)
        x = y @ params["w_o"][l].T
        if USE_FF:
            xn = _ln_ref(x, params["ln_mlp"][l])
            h = jax.nn.gelu(xn @ params["w_fc"][l].T, approximate=False)
            x = x + h @ params["w_proj"][l].T
    x = _ln_ref(x, params["ln_f"])
    return x[:, -1:, :] @ params["lm_head"].T


# --------------------------------- main ---------------------------------------
def make_params(key):
    ks = jax.random.split(key, 6)
    lm_head = 0.02 * jax.random.normal(ks[0], (VOCAB, D_EMBED), jnp.float32)
    params = {
        "lm_head": lm_head,
        "wte": lm_head,  # weight tying: wte.weight = lm_head.weight
        "wpe": 0.02 * jax.random.normal(ks[1], (CONTEXT + 1, D_EMBED), jnp.float32),
        "ln_e": jnp.ones((N_LAYER, D_EMBED), jnp.float32),
        "ln_p": jnp.ones((N_LAYER, D_EMBED), jnp.float32),
        "ln_mlp": jnp.ones((N_LAYER, D_EMBED), jnp.float32),
        "ln_f": jnp.ones((D_EMBED,), jnp.float32),
        "w_o": (0.02 / math.sqrt(2 * N_LAYER))
               * jax.random.normal(ks[2], (N_LAYER, D_EMBED, N_HEAD * D_EMBED), jnp.float32),
        "w_fc": 0.02 * jax.random.normal(ks[3], (N_LAYER, D_FF, D_EMBED), jnp.float32),
        "w_proj": 0.02 * jax.random.normal(ks[4], (N_LAYER, D_EMBED, D_FF), jnp.float32),
    }
    return params, ks[5]


if __name__ == "__main__":
    B, S = 2, 8
    key = jax.random.PRNGKey(0)
    params, key = make_params(key)
    idx = jax.random.randint(key, (B, S), 0, VOCAB, dtype=jnp.int32)

    prep = prepare_weights(params)          # one-time weight prep, out of call path
    logits = jax.block_until_ready(causal_gdm_forward(idx, prep))

    ref = jax.block_until_ready(reference_forward(idx, params))
    np.testing.assert_allclose(np.asarray(logits), np.asarray(ref),
                               rtol=1e-3, atol=1e-3)

    # TODO(synk): training branch (cross-entropy with ignore_index=-1) and the
    # host-side generate/beam_search loops are left in plain JAX/Python land.
    print("KERNEL_OK")
</pallas_src>

<mosaic_0001>
module attributes {stable_mosaic.version = 11 : i64} {
  func.func @causal_gdm_kernel(%arg0: memref<16x32xf32, #tpu.memory_space<vmem>>, %arg1: memref<9x32xf32, #tpu.memory_space<vmem>>, %arg2: memref<4x32xf32, #tpu.memory_space<vmem>>, %arg3: memref<96x32xf32, #tpu.memory_space<vmem>>, %arg4: memref<64x64xf32, #tpu.memory_space<vmem>>, %arg5: memref<1x128xf32, #tpu.memory_space<vmem>>) attributes {dimension_semantics = [], scalar_prefetch = 0 : i64, scratch_operands = 0 : i64, tpu.core_type = #tpu.core_type<tc>} {
    %c0 = arith.constant 0 : index
    %c0_0 = arith.constant 0 : index
    %0 = vector.load %arg2[%c0, %c0_0] : memref<4x32xf32, #tpu.memory_space<vmem>>, vector<1x32xf32>
    %c1 = arith.constant 1 : index
    %c0_1 = arith.constant 0 : index
    %1 = vector.load %arg2[%c1, %c0_1] : memref<4x32xf32, #tpu.memory_space<vmem>>, vector<1x32xf32>
    %c2 = arith.constant 2 : index
    %c0_2 = arith.constant 0 : index
    %2 = vector.load %arg2[%c2, %c0_2] : memref<4x32xf32, #tpu.memory_space<vmem>>, vector<1x32xf32>
    %c3 = arith.constant 3 : index
    %c0_3 = arith.constant 0 : index
    %3 = vector.load %arg2[%c3, %c0_3] : memref<4x32xf32, #tpu.memory_space<vmem>>, vector<1x32xf32>
    %c0_4 = arith.constant 0 : index
    %c0_5 = arith.constant 0 : index
    %4 = vector.load %arg3[%c0_4, %c0_5] : memref<96x32xf32, #tpu.memory_space<vmem>>, vector<32x32xf32>
    %c32 = arith.constant 32 : index
    %c0_6 = arith.constant 0 : index
    %5 = vector.load %arg3[%c32, %c0_6] : memref<96x32xf32, #tpu.memory_space<vmem>>, vector<64x32xf32>
    %c0_7 = arith.constant 0 : index
    %c0_8 = arith.constant 0 : index
    %6 = vector.load %arg4[%c0_7, %c0_8] : memref<64x64xf32, #tpu.memory_space<vmem>>, vector<32x64xf32>
    %c32_9 = arith.constant 32 : index
    %c0_10 = arith.constant 0 : index
    %7 = vector.load %arg4[%c32_9, %c0_10] : memref<64x64xf32, #tpu.memory_space<vmem>>, vector<32x64xf32>
    %c0_11 = arith.constant 0 : index
    %c0_12 = arith.constant 0 : index
    %8 = vector.load %arg0[%c0_11, %c0_12] : memref<16x32xf32, #tpu.memory_space<vmem>>, vector<16x32xf32>
    %cst = arith.constant dense<0.000000e+00> : vector<16xf32>
    %9 = vector.multi_reduction <add>, %8, %cst [1] : vector<16x32xf32> to vector<16xf32>
    %10 = vector.shape_cast %9 : vector<16xf32> to vector<16x1xf32>
    %cst_13 = arith.constant 3.200000e+01 : f32
    %11 = vector.broadcast %cst_13 : f32 to vector<16x1xf32>
    %12 = arith.divf %10, %11 : vector<16x1xf32>
    %13 = vector.broadcast %12 : vector<16x1xf32> to vector<16x32xf32>
    %14 = arith.subf %8, %13 : vector<16x32xf32>
    %15 = arith.mulf %14, %14 : vector<16x32xf32>
    %cst_14 = arith.constant dense<0.000000e+00> : vector<16xf32>
    %16 = vector.multi_reduction <add>, %15, %cst_14 [1] : vector<16x32xf32> to vector<16xf32>
    %17 = vector.shape_cast %16 : vector<16xf32> to vector<16x1xf32>
    %cst_15 = arith.constant 3.200000e+01 : f32
    %18 = vector.broadcast %cst_15 : f32 to vector<16x1xf32>
    %19 = arith.divf %17, %18 : vector<16x1xf32>
    %20 = vector.broadcast %12 : vector<16x1xf32> to vector<16x32xf32>
    %21 = arith.subf %8, %20 : vector<16x32xf32>
    %cst_16 = arith.constant 9.99999974E-6 : f32
    %22 = vector.broadcast %cst_16 : f32 to vector<16x1xf32>
    %23 = arith.addf %19, %22 : vector<16x1xf32>
    %24 = math.rsqrt %23 : vector<16x1xf32>
    %25 = vector.broadcast %24 : vector<16x1xf32> to vector<16x32xf32>
    %26 = arith.mulf %21, %25 : vector<16x32xf32>
    %27 = vector.broadcast %0 : vector<1x32xf32> to vector<16x32xf32>
    %28 = arith.mulf %26, %27 : vector<16x32xf32>
    %c0_17 = arith.constant 0 : index
    %c0_18 = arith.constant 0 : index
    %29 = vector.load %arg1[%c0_17, %c0_18] : memref<9x32xf32, #tpu.memory_space<vmem>>, vector<9x32xf32>
    %cst_19 = arith.constant dense<0.000000e+00> : vector<9xf32>
    %30 = vector.multi_reduction <add>, %29, %cst_19 [1] : vector<9x32xf32> to vector<9xf32>
    %31 = vector.shape_cast %30 : vector<9xf32> to vector<9x1xf32>
    %cst_20 = arith.constant 3.200000e+01 : f32
    %32 = vector.broadcast %cst_20 : f32 to vector<9x1xf32>
    %33 = arith.divf %31, %32 : vector<9x1xf32>
    %34 = vector.broadcast %33 : vector<9x1xf32> to vector<9x32xf32>
    %35 = arith.subf %29, %34 : vector<9x32xf32>
    %36 = arith.mulf %35, %35 : vector<9x32xf32>
    %cst_21 = arith.constant dense<0.000000e+00> : vector<9xf32>
    %37 = vector.multi_reduction <add>, %36, %cst_21 [1] : vector<9x32xf32> to vector<9xf32>
    %38 = vector.shape_cast %37 : vector<9xf32> to vector<9x1xf32>
    %cst_22 = arith.constant 3.200000e+01 : f32
    %39 = vector.broadcast %cst_22 : f32 to vector<9x1xf32>
    %40 = arith.divf %38, %39 : vector<9x1xf32>
    %41 = vector.broadcast %33 : vector<9x1xf32> to vector<9x32xf32>
    %42 = arith.subf %29, %41 : vector<9x32xf32>
    %cst_23 = arith.constant 9.99999974E-6 : f32
    %43 = vector.broadcast %cst_23 : f32 to vector<9x1xf32>
    %44 = arith.addf %40, %43 : vector<9x1xf32>
    %45 = math.rsqrt %44 : vector<9x1xf32>
    %46 = vector.broadcast %45 : vector<9x1xf32> to vector<9x32xf32>
    %47 = arith.mulf %42, %46 : vector<9x32xf32>
    %48 = vector.broadcast %1 : vector<1x32xf32> to vector<9x32xf32>
    %49 = arith.mulf %47, %48 : vector<9x32xf32>
    %50 = vector.extract_strided_slice %49 {offsets = [8, 0], sizes = [1, 32], strides = [1, 1]} : vector<9x32xf32> to vector<1x32xf32>
    %51 = vector.extract_strided_slice %49 {offsets = [0, 0], sizes = [8, 32], strides = [1, 1]} : vector<9x32xf32> to vector<8x32xf32>
    %cst_24 = arith.constant dense<0.000000e+00> : vector<1x8xf32>
    %52 = tpu.matmul %50, %51, %cst_24 {dimension_numbers = #tpu.dot_dimension_numbers<[1], [1], [0], [0], [0, 0, 1, 0], [], []>} : vector<1x32xf32>, vector<8x32xf32>, vector<1x8xf32> -> vector<1x8xf32>
    %cst_25 = arith.constant 0.176776692 : f32
    %53 = vector.broadcast %cst_25 : f32 to vector<1x8xf32>
    %54 = arith.mulf %52, %53 : vector<1x8xf32>
    %cst_26 = arith.constant -1.000000e+01 : f32
    %cst_27 = arith.constant 1.000000e+01 : f32
    %55 = vector.broadcast %cst_26 : f32 to vector<1x8xf32>
    %56 = arith.maximumf %55, %54 : vector<1x8xf32>
    %57 = vector.broadcast %cst_27 : f32 to vector<1x8xf32>
    %58 = arith.minimumf %57, %56 : vector<1x8xf32>
    %59 = math.exp %58 : vector<1x8xf32>
    %cst_28 = arith.constant dense<0.000000e+00> : vector<1xf32>
    %60 = vector.multi_reduction <add>, %59, %cst_28 [1] : vector<1x8xf32> to vector<1xf32>
    %61 = vector.shape_cast %60 : vector<1xf32> to vector<1x1xf32>
    %cst_29 = arith.constant 8.000000e+00 : f32
    %62 = vector.broadcast %cst_29 : f32 to vector<1x1xf32>
    %63 = arith.mulf %61, %62 : vector<1x1xf32>
    %64 = vector.broadcast %63 : vector<1x1xf32> to vector<1x8xf32>
    %65 = arith.divf %59, %64 : vector<1x8xf32>
    %66 = tpu.concatenate %65, %65 in 1 : vector<1x8xf32>, vector<1x8xf32> -> vector<1x16xf32>
    %67 = tpu.iota {dimensions = array<i32: 0>} : vector<2x16xi32>
    %68 = tpu.iota {dimensions = array<i32: 1>} : vector<2x16xi32>
    %c8_i32 = arith.constant 8 : i32
    %69 = vector.broadcast %c8_i32 : i32 to vector<2x16xi32>
    %70 = arith.muli %67, %69 : vector<2x16xi32>
    %71 = arith.cmpi sge, %68, %70 : vector<2x16xi32>
    %c1_i32 = arith.constant 1 : i32
    %72 = vector.broadcast %c1_i32 : i32 to vector<2x16xi32>
    %73 = arith.addi %67, %72 : vector<2x16xi32>
    %c8_i32_30 = arith.constant 8 : i32
    %74 = vector.broadcast %c8_i32_30 : i32 to vector<2x16xi32>
    %75 = arith.muli %73, %74 : vector<2x16xi32>
    %76 = arith.cmpi slt, %68, %75 : vector<2x16xi32>
    %77 = arith.andi %71, %76 : vector<2x16xi1>
    %cst_31 = arith.constant 0.000000e+00 : f32
    %78 = vector.shape_cast %66 : vector<1x16xf32> to vector<1x16xf32>
    %79 = vector.broadcast %78 : vector<1x16xf32> to vector<2x16xf32>
    %80 = vector.broadcast %cst_31 : f32 to vector<2x16xf32>
    %81 = arith.select %77, %79, %80 : vector<2x16xi1>, vector<2x16xf32>
    %cst_32 = arith.constant dense<0.000000e+00> : vector<2x32xf32>
    %82 = tpu.matmul %81, %28, %cst_32 {dimension_numbers = #tpu.dot_dimension_numbers<[1], [0], [0], [1], [0, 0, 1, 1], [], []>} : vector<2x16xf32>, vector<16x32xf32>, vector<2x32xf32> -> vector<2x32xf32>
    %cst_33 = arith.constant dense<0.000000e+00> : vector<2x32xf32>
    %83 = tpu.matmul %82, %4, %cst_33 {dimension_numbers = #tpu.dot_dimension_numbers<[1], [0], [0], [1], [0, 0, 1, 1], [], []>} : vector<2x32xf32>, vector<32x32xf32>, vector<2x32xf32> -> vector<2x32xf32>
    %cst_34 = arith.constant dense<0.000000e+00> : vector<2xf32>
    %84 = vector.multi_reduction <add>, %83, %cst_34 [1] : vector<2x32xf32> to vector<2xf32>
    %85 = vector.shape_cast %84 : vector<2xf32> to vector<2x1xf32>
    %cst_35 = arith.constant 3.200000e+01 : f32
    %86 = vector.broadcast %cst_35 : f32 to vector<2x1xf32>
    %87 = arith.divf %85, %86 : vector<2x1xf32>
    %88 = vector.broadcast %87 : vector<2x1xf32> to vector<2x32xf32>
    %89 = arith.subf %83, %88 : vector<2x32xf32>
    %90 = arith.mulf %89, %89 : vector<2x32xf32>
    %cst_36 = arith.constant dense<0.000000e+00> : vector<2xf32>
    %91 = vector.multi_reduction <add>, %90, %cst_36 [1] : vector<2x32xf32> to vector<2xf32>
    %92 = vector.shape_cast %91 : vector<2xf32> to vector<2x1xf32>
    %cst_37 = arith.constant 3.200000e+01 : f32
    %93 = vector.broadcast %cst_37 : f32 to vector<2x1xf32>
    %94 = arith.divf %92, %93 : vector<2x1xf32>
    %95 = vector.broadcast %87 : vector<2x1xf32> to vector<2x32xf32>
    %96 = arith.subf %83, %95 : vector<2x32xf32>
    %cst_38 = arith.constant 9.99999974E-6 : f32
    %97 = vector.broadcast %cst_38 : f32 to vector<2x1xf32>
    %98 = arith.addf %94, %97 : vector<2x1xf32>
    %99 = math.rsqrt %98 : vector<2x1xf32>
    %100 = vector.broadcast %99 : vector<2x1xf32> to vector<2x32xf32>
    %101 = arith.mulf %96, %100 : vector<2x32xf32>
    %102 = vector.broadcast %2 : vector<1x32xf32> to vector<2x32xf32>
    %103 = arith.mulf %101, %102 : vector<2x32xf32>
    %cst_39 = arith.constant dense<0.000000e+00> : vector<2x64xf32>
    %104 = tpu.matmul %103, %6, %cst_39 {dimension_numbers = #tpu.dot_dimension_numbers<[1], [0], [0], [1], [0, 0, 1, 1], [], []>} : vector<2x32xf32>, vector<32x64xf32>, vector<2x64xf32> -> vector<2x64xf32>
    %cst_40 = arith.constant 5.000000e-01 : f32
    %105 = vector.broadcast %cst_40 : f32 to vector<2x64xf32>
    %106 = arith.mulf %105, %104 : vector<2x64xf32>
    %cst_41 = arith.constant 0.707106769 : f32
    %107 = vector.broadcast %cst_41 : f32 to vector<2x64xf32>
    %108 = arith.mulf %104, %107 : vector<2x64xf32>
    %109 = math.absf %108 : vector<2x64xf32>
    %cst_42 = arith.constant 0.327591091 : f32
    %110 = vector.broadcast %cst_42 : f32 to vector<2x64xf32>
    %111 = arith.mulf %110, %109 : vector<2x64xf32>
    %cst_43 = arith.constant 1.000000e+00 : f32
    %112 = vector.broadcast %cst_43 : f32 to vector<2x64xf32>
    %113 = arith.addf %112, %111 : vector<2x64xf32>
    %cst_44 = arith.constant 1.000000e+00 : f32
    %114 = vector.broadcast %cst_44 : f32 to vector<2x64xf32>
    %115 = arith.divf %114, %113 : vector<2x64xf32>
    %cst_45 = arith.constant 1.06140542 : f32
    %116 = vector.broadcast %cst_45 : f32 to vector<2x64xf32>
    %117 = arith.mulf %116, %115 : vector<2x64xf32>
    %cst_46 = arith.constant -1.45315206 : f32
    %118 = vector.broadcast %cst_46 : f32 to vector<2x64xf32>
    %119 = arith.addf %117, %118 : vector<2x64xf32>
    %120 = arith.mulf %119, %115 : vector<2x64xf32>
    %cst_47 = arith.constant 1.42141378 : f32
    %121 = vector.broadcast %cst_47 : f32 to vector<2x64xf32>
    %122 = arith.addf %120, %121 : vector<2x64xf32>
    %123 = arith.mulf %122, %115 : vector<2x64xf32>
    %cst_48 = arith.constant -0.284496725 : f32
    %124 = vector.broadcast %cst_48 : f32 to vector<2x64xf32>
    %125 = arith.addf %123, %124 : vector<2x64xf32>
    %126 = arith.mulf %125, %115 : vector<2x64xf32>
    %cst_49 = arith.constant 0.254829586 : f32
    %127 = vector.broadcast %cst_49 : f32 to vector<2x64xf32>
    %128 = arith.addf %126, %127 : vector<2x64xf32>
    %129 = arith.mulf %128, %115 : vector<2x64xf32>
    %130 = arith.mulf %109, %109 : vector<2x64xf32>
    %cst_50 = arith.constant 0.000000e+00 : f32
    %131 = vector.broadcast %cst_50 : f32 to vector<2x64xf32>
    %132 = arith.subf %131, %130 : vector<2x64xf32>
    %133 = math.exp %132 : vector<2x64xf32>
    %134 = arith.mulf %129, %133 : vector<2x64xf32>
    %cst_51 = arith.constant 1.000000e+00 : f32
    %135 = vector.broadcast %cst_51 : f32 to vector<2x64xf32>
    %136 = arith.subf %135, %134 : vector<2x64xf32>
    %cst_52 = arith.constant 0.000000e+00 : f32
    %137 = vector.broadcast %cst_52 : f32 to vector<2x64xf32>
    %138 = arith.cmpf oge, %108, %137 : vector<2x64xf32>
    %cst_53 = arith.constant 0.000000e+00 : f32
    %139 = vector.broadcast %cst_53 : f32 to vector<2x64xf32>
    %140 = arith.subf %139, %136 : vector<2x64xf32>
    %141 = arith.select %138, %136, %140 : vector<2x64xi1>, vector<2x64xf32>
    %cst_54 = arith.constant 1.000000e+00 : f32
    %142 = vector.broadcast %cst_54 : f32 to vector<2x64xf32>
    %143 = arith.addf %142, %141 : vector<2x64xf32>
    %144 = arith.mulf %106, %143 : vector<2x64xf32>
    %cst_55 = arith.constant dense<0.000000e+00> : vector<2x32xf32>
    %145 = tpu.matmul %144, %5, %cst_55 {dimension_numbers = #tpu.dot_dimension_numbers<[1], [0], [0], [1], [0, 0, 1, 1], [], []>} : vector<2x64xf32>, vector<64x32xf32>, vector<2x32xf32> -> vector<2x32xf32>
    %146 = arith.addf %83, %145 : vector<2x32xf32>
    %cst_56 = arith.constant dense<0.000000e+00> : vector<2xf32>
    %147 = vector.multi_reduction <add>, %146, %cst_56 [1] : vector<2x32xf32> to vector<2xf32>
    %148 = vector.shape_cast %147 : vector<2xf32> to vector<2x1xf32>
    %cst_57 = arith.constant 3.200000e+01 : f32
    %149 = vector.broadcast %cst_57 : f32 to vector<2x1xf32>
    %150 = arith.divf %148, %149 : vector<2x1xf32>
    %151 = vector.broadcast %150 : vector<2x1xf32> to vector<2x32xf32>
    %152 = arith.subf %146, %151 : vector<2x32xf32>
    %153 = arith.mulf %152, %152 : vector<2x32xf32>
    %cst_58 = arith.constant dense<0.000000e+00> : vector<2xf32>
    %154 = vector.multi_reduction <add>, %153, %cst_58 [1] : vector<2x32xf32> to vector<2xf32>
    %155 = vector.shape_cast %154 : vector<2xf32> to vector<2x1xf32>
    %cst_59 = arith.constant 3.200000e+01 : f32
    %156 = vector.broadcast %cst_59 : f32 to vector<2x1xf32>
    %157 = arith.divf %155, %156 : vector<2x1xf32>
    %158 = vector.broadcast %150 : vector<2x1xf32> to vector<2x32xf32>
    %159 = arith.subf %146, %158 : vector<2x32xf32>
    %cst_60 = arith.constant 9.99999974E-6 : f32
    %160 = vector.broadcast %cst_60 : f32 to vector<2x1xf32>
    %161 = arith.addf %157, %160 : vector<2x1xf32>
    %162 = math.rsqrt %161 : vector<2x1xf32>
    %163 = vector.broadcast %162 : vector<2x1xf32> to vector<2x32xf32>
    %164 = arith.mulf %159, %163 : vector<2x32xf32>
    %165 = vector.broadcast %3 : vector<1x32xf32> to vector<2x32xf32>
    %166 = arith.mulf %164, %165 : vector<2x32xf32>
    %cst_61 = arith.constant dense<0.000000e+00> : vector<2x64xf32>
    %167 = tpu.matmul %166, %7, %cst_61 {dimension_numbers = #tpu.dot_dimension_numbers<[1], [0], [0], [1], [0, 0, 1, 1], [], []>} : vector<2x32xf32>, vector<32x64xf32>, vector<2x64xf32> -> vector<2x64xf32>
    %168 = vector.extract_strided_slice %167 {offsets = [0, 0], sizes = [1, 64], strides = [1, 1]} : vector<2x64xf32> to vector<1x64xf32>
    %169 = vector.extract_strided_slice %167 {offsets = [1, 0], sizes = [1, 64], strides = [1, 1]} : vector<2x64xf32> to vector<1x64xf32>
    %170 = tpu.concatenate %168, %169 in 1 : vector<1x64xf32>, vector<1x64xf32> -> vector<1x128xf32>
    %c0_62 = arith.constant 0 : index
    %c0_63 = arith.constant 0 : index
    %171 = vector.load %arg5[%c0_62, %c0_63] : memref<1x128xf32, #tpu.memory_space<vmem>>, vector<1x128xf32>
    tpu.vector_store %arg5[%c0_62, %c0_63], %170 {strides = array<i32>} : memref<1x128xf32, #tpu.memory_space<vmem>>, vector<1x128xf32>,
    return
  }
}

</mosaic_0001>

<llo_original>
// kernel: causal_gdm_forward.1
$region0: #{causal_gdm_forward.1}
  #allocation0 [shape = 'u32[]', space=smem, size = 0x4, offset = 0x4, fixed_abs, tag = 'smem constant byte address 0x4 - core index']
  #allocation1 [shape = 'u32[144,128]{1,0:T(1,128)}', space=vmem, size = 0x12000, scoped, tag = 'internal scratch']
  %s0 = inlined_call_operand.vmem [shape: f32[16,32], index: 0, kind: input, shape index: {}]
  %s1 = inlined_call_operand.vmem [shape: f32[9,32], index: 1, kind: input, shape index: {}]
  %s2 = inlined_call_operand.vmem [shape: f32[4,32], index: 2, kind: input, shape index: {}]
  %s3 = inlined_call_operand.vmem [shape: f32[96,32], index: 3, kind: input, shape index: {}]
  %s4 = inlined_call_operand.vmem [shape: f32[64,64], index: 4, kind: input, shape index: {}]
  %s5 = inlined_call_operand.vmem [shape: f32[1,128], index: 5, kind: output, shape index: {}]
  %s6 = sld [smem:[#allocation0]]
  $region30: #{causal_gdm_forward.1} parent=0
    _
  %s8 = ssub.s32 1, %s6
  %s9 = scalar_select 0, %s8, %s6
  // Predicated region
  $region2: #{causal_gdm_forward.1} parent=0 // pred_check
    _
  $region3: #{causal_gdm_forward.1} parent=0 // pred_check_branch
    %11 = sbr.rel (0) target = $region5
  $region4: #{causal_gdm_forward.1} parent=0 // pred_region
    _
  $region5: #{causal_gdm_forward.1} parent=0 // pred_fallthru
    _
  // Predicated region
  $region6: #{causal_gdm_forward.1} parent=0 // pred_check
    _
  $region7: #{causal_gdm_forward.1} parent=0 // pred_check_branch
    %13 = sbr.rel (0) target = $region9
  $region8: #{causal_gdm_forward.1} parent=0 // pred_region
    _
  $region9: #{causal_gdm_forward.1} parent=0 // pred_fallthru
    _
  // Predicated region
  $region10: #{causal_gdm_forward.1} parent=0 // pred_check
    _
  $region11: #{causal_gdm_forward.1} parent=0 // pred_check_branch
    %15 = sbr.rel (0) target = $region13
  $region12: #{causal_gdm_forward.1} parent=0 // pred_region
    _
  $region13: #{causal_gdm_forward.1} parent=0 // pred_fallthru
    _
  // Predicated region
  $region14: #{causal_gdm_forward.1} parent=0 // pred_check
    _
  $region15: #{causal_gdm_forward.1} parent=0 // pred_check_branch
    %17 = sbr.rel (0) target = $region17
  $region16: #{causal_gdm_forward.1} parent=0 // pred_region
    _
  $region17: #{causal_gdm_forward.1} parent=0 // pred_fallthru
    _
  // Predicated region
  $region18: #{causal_gdm_forward.1} parent=0 // pred_check
    _
  $region19: #{causal_gdm_forward.1} parent=0 // pred_check_branch
    %19 = sbr.rel (0) target = $region21
  $region20: #{causal_gdm_forward.1} parent=0 // pred_region
    _
  $region21: #{causal_gdm_forward.1} parent=0 // pred_fallthru
    _
  %v20 = vld [vmem:[%s2] sm:$0x1]
  %v21 = vld [vmem:[%s2 + $0x1] sm:$0x1]
  %v22 = vld [vmem:[%s2 + $0x2] sm:$0x1]
  %v23 = vld [vmem:[%s2 + $0x3] sm:$0x1]
  %v24 = vld [vmem:[%s3] sm:$0xff]
  %v25 = vld [vmem:[%s3 + $0x8] sm:$0xff]
  %v26 = vld [vmem:[%s3 + $0x10] sm:$0xff]
  %v27 = vld [vmem:[%s3 + $0x18] sm:$0xff]
  %v28 = vld [vmem:[%s3 + $0x20] sm:$0xff]
  %v29 = vld [vmem:[%s3 + $0x28] sm:$0xff]
  %v30 = vld [vmem:[%s3 + $0x30] sm:$0xff]
  %v31 = vld [vmem:[%s3 + $0x38] sm:$0xff]
  %v32 = vld [vmem:[%s3 + $0x40] sm:$0xff]
  %v33 = vld [vmem:[%s3 + $0x48] sm:$0xff]
  %v34 = vld [vmem:[%s3 + $0x50] sm:$0xff]
  %v35 = vld [vmem:[%s3 + $0x58] sm:$0xff]
  %v36 = vld [vmem:[%s4] sm:$0xff]
  %v37 = vld [vmem:[%s4 + $0x8] sm:$0xff]
  %v38 = vld [vmem:[%s4 + $0x10] sm:$0xff]
  %v39 = vld [vmem:[%s4 + $0x18] sm:$0xff]
  %v40 = vld [vmem:[%s4 + $0x20] sm:$0xff]
  %v41 = vld [vmem:[%s4 + $0x28] sm:$0xff]
  %v42 = vld [vmem:[%s4 + $0x30] sm:$0xff]
  %v43 = vld [vmem:[%s4 + $0x38] sm:$0xff]
  %v44 = vld [vmem:[%s0] sm:$0xff]
  %v45 = vld [vmem:[%s0 + $0x8] sm:$0xff]
  %vm46 = vcmask 261120
  %v47 = vsel %vm46, %v44, 0.0
  %48 = vadd.xlane.f32.xlu0 %v47
  %v49 = vpop.xlane.xlu0 %48
  %v50 = vsel %vm46, %v45, 0.0
  %51 = vadd.xlane.f32.xlu0 %v50
  %v52 = vpop.xlane.xlu0 %51
  %v53 = vrcp.pop 32.0
  %v54 = vmul.f32 %v49, %v53
  %v55 = vmul.f32 %v52, %v53
  %v56 = vsub.f32 %v44, %v54
  %v57 = vsub.f32 %v45, %v55
  %v58 = vmul.f32 %v56, %v56
  %v59 = vmul.f32 %v57, %v57
  %v60 = vsel %vm46, %v58, 0.0
  %61 = vadd.xlane.f32.xlu0 %v60
  %v62 = vpop.xlane.xlu0 %61
  %v63 = vsel %vm46, %v59, 0.0
  %64 = vadd.xlane.f32.xlu0 %v63
  %v65 = vpop.xlane.xlu0 %64
  %v66 = vmul.f32 %v62, %v53
  %v67 = vmul.f32 %v65, %v53
  %v68 = vadd.f32 %v66, 1e-05
  %v69 = vadd.f32 %v67, 1e-05
  %v70 = vrsqrt.pop %v68
  %v71 = vrsqrt.pop %v69
  %v72 = vmul.f32 %v56, %v70
  %v73 = vmul.f32 %v57, %v71
  %v74 = vlaneseq
  %v75 = vshrl.u32 %v74, 7
  %v76 = vsub.s32 0, %v75
  %v77 = vrot.slane %v20, %v76
  %v78 = vmul.f32 %v72, %v77
  %v79 = vmul.f32 %v73, %v77
  %v80 = vld [vmem:[%s1] sm:$0xff]
  %v81 = vld [vmem:[%s1 + $0x8] sm:$0x1]
  %v82 = vsel %vm46, %v80, 0.0
  %83 = vadd.xlane.f32.xlu0 %v82
  %v84 = vpop.xlane.xlu0 %83
  %vm85 = vcmask 253952
  %v86 = vsel %vm85, %v81, 0.0
  %87 = vadd.xlane.f32.xlu0 %v86
  %v88 = vpop.xlane.xlu0 %87
  %v89 = vmul.f32 %v84, %v53
  %v90 = vmul.f32 %v88, %v53
  %v91 = vsub.f32 %v80, %v89
  %v92 = vsub.f32 %v81, %v90
  %v93 = vmul.f32 %v91, %v91
  %v94 = vmul.f32 %v92, %v92
  %v95 = vsel %vm46, %v93, 0.0
  %96 = vadd.xlane.f32.xlu0 %v95
  %v97 = vpop.xlane.xlu0 %96
  %v98 = vsel %vm85, %v94, 0.0
  %99 = vadd.xlane.f32.xlu0 %v98
  %v100 = vpop.xlane.xlu0 %99
  %v101 = vmul.f32 %v97, %v53
  %v102 = vmul.f32 %v100, %v53
  %v103 = vadd.f32 %v101, 1e-05
  %v104 = vadd.f32 %v102, 1e-05
  %v105 = vrsqrt.pop %v103
  %v106 = vrsqrt.pop %v104
  %v107 = vmul.f32 %v91, %v105
  %v108 = vmul.f32 %v92, %v106
  %v109 = vlaneseq
  %v110 = vshrl.u32 %v109, 7
  %v111 = vsub.s32 0, %v110
  %v112 = vrot.slane %v21, %v111
  %v113 = vmul.f32 %v107, %v112
  %v114 = vmul.f32 %v108, %v112
  %v116 = vsel %vm46, %v114, 0
  %v119 = vsel %vm46, %v113, 0
  %121 = vmatprep.subr.mxu0 0.0
  %122 = vmatpush1.xpose.msra.mxu0 %v119
  %123 = vmatprep.subr.mxu0 0.0
  %124 = vmatpush1.xpose.msra.mxu0 0.0
  %125 = vmatprep.subr.mxu0 0.0
  %126 = vmatpush1.xpose.msra.mxu0 0.0
  %127 = vmatprep.subr.mxu0 0.0
  %128 = vmatpush1.xpose.msra.mxu0 0.0
  %129 = vmatprep.subr.mxu0 0.0
  %130 = vmatpush1.xpose.msra.mxu0 0.0
  %131 = vmatprep.subr.mxu0 0.0
  %132 = vmatpush1.xpose.msra.mxu0 0.0
  %133 = vmatprep.subr.mxu0 0.0
  %134 = vmatpush1.xpose.msra.mxu0 0.0
  %135 = vmatprep.subr.mxu0 0.0
  %136 = vmatpush1.xpose.msra.mxu0 0.0
  %137 = vmatprep.subr.mxu0 0.0
  %138 = vmatpush1.xpose.msra.mxu0 0.0
  %139 = vmatprep.subr.mxu0 0.0
  %140 = vmatpush1.xpose.msra.mxu0 0.0
  %141 = vmatprep.subr.mxu0 0.0
  %142 = vmatpush1.xpose.msra.mxu0 0.0
  %143 = vmatprep.subr.mxu0 0.0
  %144 = vmatpush1.xpose.msra.mxu0 0.0
  %145 = vmatprep.subr.mxu0 0.0
  %146 = vmatpush1.xpose.msra.mxu0 0.0
  %147 = vmatprep.subr.mxu0 0.0
  %148 = vmatpush1.xpose.msra.mxu0 0.0
  %149 = vmatprep.subr.mxu0 0.0
  %150 = vmatpush1.xpose.msra.mxu0 0.0
  %151 = vmatprep.subr.mxu0 0.0
  %152 = vmatpush1.xpose.msra.mxu0 0.0
  %153 = vmatprep.subr.mxu0 0.0
  %154 = vmatpush1.xpose.msra.mxu0 0.0
  %155 = vmatprep.subr.mxu0 0.0
  %156 = vmatpush1.xpose.msra.mxu0 0.0
  %157 = vmatprep.subr.mxu0 0.0
  %158 = vmatpush1.xpose.msra.mxu0 0.0
  %159 = vmatprep.subr.mxu0 0.0
  %160 = vmatpush1.xpose.msra.mxu0 0.0
  %161 = vmatprep.subr.mxu0 0.0
  %162 = vmatpush1.xpose.msra.mxu0 0.0
  %163 = vmatprep.subr.mxu0 0.0
  %164 = vmatpush1.xpose.msra.mxu0 0.0
  %165 = vmatprep.subr.mxu0 0.0
  %166 = vmatpush1.xpose.msra.mxu0 0.0
  %167 = vmatprep.subr.mxu0 0.0
  %168 = vmatpush1.xpose.msra.mxu0 0.0
  %169 = vmatprep.subr.mxu0 0.0
  %170 = vmatpush1.xpose.msra.mxu0 0.0
  %171 = vmatprep.subr.mxu0 0.0
  %172 = vmatpush1.xpose.msra.mxu0 0.0
  %173 = vmatprep.subr.mxu0 0.0
  %174 = vmatpush1.xpose.msra.mxu0 0.0
  %175 = vmatprep.subr.mxu0 0.0
  %176 = vmatpush1.xpose.msra.mxu0 0.0
  %177 = vmatprep.subr.mxu0 0.0
  %178 = vmatpush1.xpose.msra.mxu0 0.0
  %179 = vmatprep.subr.mxu0 0.0
  %180 = vmatpush1.xpose.msra.mxu0 0.0
  %181 = vmatprep.subr.mxu0 0.0
  %182 = vmatpush1.xpose.msra.mxu0 0.0
  %183 = vmatprep.subr.mxu0 0.0
  %184 = vmatpush1.xpose.msra.mxu0 0.0
  %185 = vmatprep.mubr.f32.mxu0 0.0
  %186 = vmatmul.mubr.f32.gmra.mrb[0].mxu0 %v116
  %v187 = vpop.f32.mrb[0].mxu0
  %v188 = vadd.f32 0.0, %v187
  %v189 = vpop.f32.mrb[0].mxu0
  %190 = vdwg.mxu0
  %v191 = vmul.f32 %v188, 0.17677669
  %v192 = vmax.f32 %v191, -10.0
  %v193 = vmin.f32 %v192, 10.0
  %v194 = vmul.f32 %v193, 1.442695
  %v195 = vpow.pop %v194
  %vm196 = vcmask 57344
  %v197 = vsel %vm196, %v195, 0.0
  %198 = vadd.xlane.f32.xlu0 %v197
  %v199 = vpop.xlane.xlu0 %198
  %v200 = vmul.f32 %v199, 8.0
  %v201 = vrcp.pop %v200
  %v202 = vmul.f32 %v195, %v201
  %204 = vrot.lane.b32.xlu0 %v202, 8
  %v205 = vpop.permute.xlu0 %204
  %vm207 = vcmask 64512
  %v208 = vsel %vm207, %v202, %v205
  %v209 = vlaneseq
  %v210 = vshrl.u32 %v209, 7
  %v211 = vlaneseq
  %v212 = vand.u32 %v211, 127
  %v213 = vmul.u32 %v210, 8
  %vm214 = vcmp.ge.s32.totalorder %v212, %v213
  %v215 = vadd.s32 %v210, 1
  %v216 = vmul.u32 %v215, 8
  %vm217 = vcmp.lt.s32.totalorder %v212, %v216
  %vm218 = vmand %vm214, %vm217
  %v219 = vlaneseq
  %v220 = vshrl.u32 %v219, 7
  %v221 = vsub.s32 0, %v220
  %v222 = vrot.slane %v208, %v221
  %v223 = vsel %vm218, %v222, 0.0
  %vm224 = vcmask 130048
  %v226 = vsel %vm224, %v223, 0
  %228 = vmatprep.subr.mxu0 0.0
  %229 = vmatpush1.msra.mxu0 %v78
  %230 = vmatprep.subr.mxu0 0.0
  %231 = vmatpush1.msra.mxu0 %v79
  %232 = vmatprep.subr.mxu0 0.0
  %233 = vmatpush1.msra.mxu0 0.0
  %234 = vmatprep.subr.mxu0 0.0
  %235 = vmatpush1.msra.mxu0 0.0
  %236 = vmatprep.subr.mxu0 0.0
  %237 = vmatpush1.msra.mxu0 0.0
  %238 = vmatprep.subr.mxu0 0.0
  %239 = vmatpush1.msra.mxu0 0.0
  %240 = vmatprep.subr.mxu0 0.0
  %241 = vmatpush1.msra.mxu0 0.0
  %242 = vmatprep.subr.mxu0 0.0
  %243 = vmatpush1.msra.mxu0 0.0
  %244 = vmatprep.subr.mxu0 0.0
  %245 = vmatpush1.msra.mxu0 0.0
  %246 = vmatprep.subr.mxu0 0.0
  %247 = vmatpush1.msra.mxu0 0.0
  %248 = vmatprep.subr.mxu0 0.0
  %249 = vmatpush1.msra.mxu0 0.0
  %250 = vmatprep.subr.mxu0 0.0
  %251 = vmatpush1.msra.mxu0 0.0
  %252 = vmatprep.subr.mxu0 0.0
  %253 = vmatpush1.msra.mxu0 0.0
  %254 = vmatprep.subr.mxu0 0.0
  %255 = vmatpush1.msra.mxu0 0.0
  %256 = vmatprep.subr.mxu0 0.0
  %257 = vmatpush1.msra.mxu0 0.0
  %258 = vmatprep.subr.mxu0 0.0
  %259 = vmatpush1.msra.mxu0 0.0
  %260 = vmatprep.subr.mxu0 0.0
  %261 = vmatpush1.msra.mxu0 0.0
  %262 = vmatprep.subr.mxu0 0.0
  %263 = vmatpush1.msra.mxu0 0.0
  %264 = vmatprep.subr.mxu0 0.0
  %265 = vmatpush1.msra.mxu0 0.0
  %266 = vmatprep.subr.mxu0 0.0
  %267 = vmatpush1.msra.mxu0 0.0
  %268 = vmatprep.subr.mxu0 0.0
  %269 = vmatpush1.msra.mxu0 0.0
  %270 = vmatprep.subr.mxu0 0.0
  %271 = vmatpush1.msra.mxu0 0.0
  %272 = vmatprep.subr.mxu0 0.0
  %273 = vmatpush1.msra.mxu0 0.0
  %274 = vmatprep.subr.mxu0 0.0
  %275 = vmatpush1.msra.mxu0 0.0
  %276 = vmatprep.subr.mxu0 0.0
  %277 = vmatpush1.msra.mxu0 0.0
  %278 = vmatprep.subr.mxu0 0.0
  %279 = vmatpush1.msra.mxu0 0.0
  %280 = vmatprep.subr.mxu0 0.0
  %281 = vmatpush1.msra.mxu0 0.0
  %282 = vmatprep.subr.mxu0 0.0
  %283 = vmatpush1.msra.mxu0 0.0
  %284 = vmatprep.subr.mxu0 0.0
  %285 = vmatpush1.msra.mxu0 0.0
  %286 = vmatprep.subr.mxu0 0.0
  %287 = vmatpush1.msra.mxu0 0.0
  %288 = vmatprep.subr.mxu0 0.0
  %289 = vmatpush1.msra.mxu0 0.0
  %290 = vmatprep.subr.mxu0 0.0
  %291 = vmatpush1.msra.mxu0 0.0
  %292 = vmatprep.mubr.f32.mxu0 0.0
  %293 = vmatmul.mubr.f32.gmra.mrb[0].mxu0 %v226
  %v294 = vpop.f32.mrb[0].mxu0
  %v295 = vadd.f32 0.0, %v294
  %v296 = vpop.f32.mrb[0].mxu0
  %297 = vdwg.mxu0
  %v299 = vsel %vm46, %v295, 0
  %301 = vmatprep.subr.mxu0 0.0
  %302 = vmatpush1.msra.mxu0 %v24
  %303 = vmatprep.subr.mxu0 0.0
  %304 = vmatpush1.msra.mxu0 %v25
  %305 = vmatprep.subr.mxu0 0.0
  %306 = vmatpush1.msra.mxu0 %v26
  %307 = vmatprep.subr.mxu0 0.0
  %308 = vmatpush1.msra.mxu0 %v27
  %309 = vmatprep.subr.mxu0 0.0
  %310 = vmatpush1.msra.mxu0 0.0
  %311 = vmatprep.subr.mxu0 0.0
  %312 = vmatpush1.msra.mxu0 0.0
  %313 = vmatprep.subr.mxu0 0.0
  %314 = vmatpush1.msra.mxu0 0.0
  %315 = vmatprep.subr.mxu0 0.0
  %316 = vmatpush1.msra.mxu0 0.0
  %317 = vmatprep.subr.mxu0 0.0
  %318 = vmatpush1.msra.mxu0 0.0
  %319 = vmatprep.subr.mxu0 0.0
  %320 = vmatpush1.msra.mxu0 0.0
  %321 = vmatprep.subr.mxu0 0.0
  %322 = vmatpush1.msra.mxu0 0.0
  %323 = vmatprep.subr.mxu0 0.0
  %324 = vmatpush1.msra.mxu0 0.0
  %325 = vmatprep.subr.mxu0 0.0
  %326 = vmatpush1.msra.mxu0 0.0
  %327 = vmatprep.subr.mxu0 0.0
  %328 = vmatpush1.msra.mxu0 0.0
  %329 = vmatprep.subr.mxu0 0.0
  %330 = vmatpush1.msra.mxu0 0.0
  %331 = vmatprep.subr.mxu0 0.0
  %332 = vmatpush1.msra.mxu0 0.0
  %333 = vmatprep.subr.mxu0 0.0
  %334 = vmatpush1.msra.mxu0 0.0
  %335 = vmatprep.subr.mxu0 0.0
  %336 = vmatpush1.msra.mxu0 0.0
  %337 = vmatprep.subr.mxu0 0.0
  %338 = vmatpush1.msra.mxu0 0.0
  %339 = vmatprep.subr.mxu0 0.0
  %340 = vmatpush1.msra.mxu0 0.0
  %341 = vmatprep.subr.mxu0 0.0
  %342 = vmatpush1.msra.mxu0 0.0
  %343 = vmatprep.subr.mxu0 0.0
  %344 = vmatpush1.msra.mxu0 0.0
  %345 = vmatprep.subr.mxu0 0.0
  %346 = vmatpush1.msra.mxu0 0.0
  %347 = vmatprep.subr.mxu0 0.0
  %348 = vmatpush1.msra.mxu0 0.0
  %349 = vmatprep.subr.mxu0 0.0
  %350 = vmatpush1.msra.mxu0 0.0
  %351 = vmatprep.subr.mxu0 0.0
  %352 = vmatpush1.msra.mxu0 0.0
  %353 = vmatprep.subr.mxu0 0.0
  %354 = vmatpush1.msra.mxu0 0.0
  %355 = vmatprep.subr.mxu0 0.0
  %356 = vmatpush1.msra.mxu0 0.0
  %357 = vmatprep.subr.mxu0 0.0
  %358 = vmatpush1.msra.mxu0 0.0
  %359 = vmatprep.subr.mxu0 0.0
  %360 = vmatpush1.msra.mxu0 0.0
  %361 = vmatprep.subr.mxu0 0.0
  %362 = vmatpush1.msra.mxu0 0.0
  %363 = vmatprep.subr.mxu0 0.0
  %364 = vmatpush1.msra.mxu0 0.0
  %365 = vmatprep.mubr.f32.mxu0 0.0
  %366 = vmatmul.mubr.f32.gmra.mrb[0].mxu0 %v299
  %v367 = vpop.f32.mrb[0].mxu0
  %v368 = vadd.f32 0.0, %v367
  %v369 = vpop.f32.mrb[0].mxu0
  %370 = vdwg.mxu0
  %vm371 = vcmask 254976
  %v372 = vsel %vm371, %v368, 0.0
  %373 = vadd.xlane.f32.xlu0 %v372
  %v374 = vpop.xlane.xlu0 %373
  %v375 = vmul.f32 %v374, %v53
  %v376 = vsub.f32 %v368, %v375
  %v377 = vmul.f32 %v376, %v376
  %v378 = vsel %vm371, %v377, 0.0
  %379 = vadd.xlane.f32.xlu0 %v378
  %v380 = vpop.xlane.xlu0 %379
  %v381 = vmul.f32 %v380, %v53
  %v382 = vadd.f32 %v381, 1e-05
  %v383 = vrsqrt.pop %v382
  %v384 = vmul.f32 %v376, %v383
  %v385 = vlaneseq
  %v386 = vshrl.u32 %v385, 7
  %v387 = vsub.s32 0, %v386
  %v388 = vrot.slane %v22, %v387
  %v389 = vmul.f32 %v384, %v388
  %v391 = vsel %vm46, %v389, 0
  %393 = vmatprep.subr.mxu0 0.0
  %394 = vmatpush1.msra.mxu0 %v36
  %395 = vmatprep.subr.mxu0 0.0
  %396 = vmatpush1.msra.mxu0 %v37
  %397 = vmatprep.subr.mxu0 0.0
  %398 = vmatpush1.msra.mxu0 %v38
  %399 = vmatprep.subr.mxu0 0.0
  %400 = vmatpush1.msra.mxu0 %v39
  %401 = vmatprep.subr.mxu0 0.0
  %402 = vmatpush1.msra.mxu0 0.0
  %403 = vmatprep.subr.mxu0 0.0
  %404 = vmatpush1.msra.mxu0 0.0
  %405 = vmatprep.subr.mxu0 0.0
  %406 = vmatpush1.msra.mxu0 0.0
  %407 = vmatprep.subr.mxu0 0.0
  %408 = vmatpush1.msra.mxu0 0.0
  %409 = vmatprep.subr.mxu0 0.0
  %410 = vmatpush1.msra.mxu0 0.0
  %411 = vmatprep.subr.mxu0 0.0
  %412 = vmatpush1.msra.mxu0 0.0
  %413 = vmatprep.subr.mxu0 0.0
  %414 = vmatpush1.msra.mxu0 0.0
  %415 = vmatprep.subr.mxu0 0.0
  %416 = vmatpush1.msra.mxu0 0.0
  %417 = vmatprep.subr.mxu0 0.0
  %418 = vmatpush1.msra.mxu0 0.0
  %419 = vmatprep.subr.mxu0 0.0
  %420 = vmatpush1.msra.mxu0 0.0
  %421 = vmatprep.subr.mxu0 0.0
  %422 = vmatpush1.msra.mxu0 0.0
  %423 = vmatprep.subr.mxu0 0.0
  %424 = vmatpush1.msra.mxu0 0.0
  %425 = vmatprep.subr.mxu0 0.0
  %426 = vmatpush1.msra.mxu0 0.0
  %427 = vmatprep.subr.mxu0 0.0
  %428 = vmatpush1.msra.mxu0 0.0
  %429 = vmatprep.subr.mxu0 0.0
  %430 = vmatpush1.msra.mxu0 0.0
  %431 = vmatprep.subr.mxu0 0.0
  %432 = vmatpush1.msra.mxu0 0.0
  %433 = vmatprep.subr.mxu0 0.0
  %434 = vmatpush1.msra.mxu0 0.0
  %435 = vmatprep.subr.mxu0 0.0
  %436 = vmatpush1.msra.mxu0 0.0
  %437 = vmatprep.subr.mxu0 0.0
  %438 = vmatpush1.msra.mxu0 0.0
  %439 = vmatprep.subr.mxu0 0.0
  %440 = vmatpush1.msra.mxu0 0.0
  %441 = vmatprep.subr.mxu0 0.0
  %442 = vmatpush1.msra.mxu0 0.0
  %443 = vmatprep.subr.mxu0 0.0
  %444 = vmatpush1.msra.mxu0 0.0
  %445 = vmatprep.subr.mxu0 0.0
  %446 = vmatpush1.msra.mxu0 0.0
  %447 = vmatprep.subr.mxu0 0.0
  %448 = vmatpush1.msra.mxu0 0.0
  %449 = vmatprep.subr.mxu0 0.0
  %450 = vmatpush1.msra.mxu0 0.0
  %451 = vmatprep.subr.mxu0 0.0
  %452 = vmatpush1.msra.mxu0 0.0
  %453 = vmatprep.subr.mxu0 0.0
  %454 = vmatpush1.msra.mxu0 0.0
  %455 = vmatprep.subr.mxu0 0.0
  %456 = vmatpush1.msra.mxu0 0.0
  %457 = vmatprep.mubr.f32.mxu0 0.0
  %458 = vmatmul.mubr.f32.gmra.mrb[0].mxu0 %v391
  %v459 = vpop.f32.mrb[0].mxu0
  %v460 = vadd.f32 0.0, %v459
  %v461 = vpop.f32.mrb[0].mxu0
  %462 = vdwg.mxu0
  %v463 = vmul.f32 %v460, 0.5
  %v464 = vmul.f32 %v460, 0.70710677
  %v465 = vand.u32 2147483647, %v464
  %v466 = vmul.f32 %v465, 0.3275911
  %v467 = vadd.f32 %v466, 1.0
  %v468 = vrcp.pop %v467
  %v469 = vmul.f32 1.0, %v468
  %v470 = vmul.f32 %v469, 1.0614054
  %v471 = vadd.f32 %v470, -1.4531521
  %v472 = vmul.f32 %v471, %v469
  %v473 = vadd.f32 %v472, 1.4214138
  %v474 = vmul.f32 %v473, %v469
  %v475 = vadd.f32 %v474, -0.28449672
  %v476 = vmul.f32 %v475, %v469
  %v477 = vadd.f32 %v476, 0.2548296
  %v478 = vmul.f32 %v477, %v469
  %v479 = vmul.f32 %v465, %v465
  %v480 = vsub.f32 0.0, %v479
  %v481 = vmul.f32 %v480, 1.442695
  %v482 = vpow.pop %v481
  %v483 = vmul.f32 %v478, %v482
  %v484 = vsub.f32 1.0, %v483
  %vm485 = vcmp.ge.f32.partialorder %v464, 0.0
  %v486 = vsub.f32 0.0, %v484
  %v487 = vsel %vm485, %v484, %v486
  %v488 = vadd.f32 %v487, 1.0
  %v489 = vmul.f32 %v463, %v488
  %vm490 = vcmask 523264
  %v492 = vsel %vm490, %v489, 0
  %494 = vmatprep.subr.mxu0 0.0
  %495 = vmatpush1.msra.mxu0 %v28
  %496 = vmatprep.subr.mxu0 0.0
  %497 = vmatpush1.msra.mxu0 %v29
  %498 = vmatprep.subr.mxu0 0.0
  %499 = vmatpush1.msra.mxu0 %v30
  %500 = vmatprep.subr.mxu0 0.0
  %501 = vmatpush1.msra.mxu0 %v31
  %502 = vmatprep.subr.mxu0 0.0
  %503 = vmatpush1.msra.mxu0 %v32
  %504 = vmatprep.subr.mxu0 0.0
  %505 = vmatpush1.msra.mxu0 %v33
  %506 = vmatprep.subr.mxu0 0.0
  %507 = vmatpush1.msra.mxu0 %v34
  %508 = vmatprep.subr.mxu0 0.0
  %509 = vmatpush1.msra.mxu0 %v35
  %510 = vmatprep.subr.mxu0 0.0
  %511 = vmatpush1.msra.mxu0 0.0
  %512 = vmatprep.subr.mxu0 0.0
  %513 = vmatpush1.msra.mxu0 0.0
  %514 = vmatprep.subr.mxu0 0.0
  %515 = vmatpush1.msra.mxu0 0.0
  %516 = vmatprep.subr.mxu0 0.0
  %517 = vmatpush1.msra.mxu0 0.0
  %518 = vmatprep.subr.mxu0 0.0
  %519 = vmatpush1.msra.mxu0 0.0
  %520 = vmatprep.subr.mxu0 0.0
  %521 = vmatpush1.msra.mxu0 0.0
  %522 = vmatprep.subr.mxu0 0.0
  %523 = vmatpush1.msra.mxu0 0.0
  %524 = vmatprep.subr.mxu0 0.0
  %525 = vmatpush1.msra.mxu0 0.0
  %526 = vmatprep.subr.mxu0 0.0
  %527 = vmatpush1.msra.mxu0 0.0
  %528 = vmatprep.subr.mxu0 0.0
  %529 = vmatpush1.msra.mxu0 0.0
  %530 = vmatprep.subr.mxu0 0.0
  %531 = vmatpush1.msra.mxu0 0.0
  %532 = vmatprep.subr.mxu0 0.0
  %533 = vmatpush1.msra.mxu0 0.0
  %534 = vmatprep.subr.mxu0 0.0
  %535 = vmatpush1.msra.mxu0 0.0
  %536 = vmatprep.subr.mxu0 0.0
  %537 = vmatpush1.msra.mxu0 0.0
  %538 = vmatprep.subr.mxu0 0.0
  %539 = vmatpush1.msra.mxu0 0.0
  %540 = vmatprep.subr.mxu0 0.0
  %541 = vmatpush1.msra.mxu0 0.0
  %542 = vmatprep.subr.mxu0 0.0
  %543 = vmatpush1.msra.mxu0 0.0
  %544 = vmatprep.subr.mxu0 0.0
  %545 = vmatpush1.msra.mxu0 0.0
  %546 = vmatprep.subr.mxu0 0.0
  %547 = vmatpush1.msra.mxu0 0.0
  %548 = vmatprep.subr.mxu0 0.0
  %549 = vmatpush1.msra.mxu0 0.0
  %550 = vmatprep.subr.mxu0 0.0
  %551 = vmatpush1.msra.mxu0 0.0
  %552 = vmatprep.subr.mxu0 0.0
  %553 = vmatpush1.msra.mxu0 0.0
  %554 = vmatprep.subr.mxu0 0.0
  %555 = vmatpush1.msra.mxu0 0.0
  %556 = vmatprep.subr.mxu0 0.0
  %557 = vmatpush1.msra.mxu0 0.0
  %558 = vmatprep.mubr.f32.mxu0 0.0
  %559 = vmatmul.mubr.f32.gmra.mrb[0].mxu0 %v492
  %v560 = vpop.f32.mrb[0].mxu0
  %v561 = vadd.f32 0.0, %v560
  %v562 = vpop.f32.mrb[0].mxu0
  %563 = vdwg.mxu0
  %v564 = vadd.f32 %v368, %v561
  %v565 = vsel %vm371, %v564, 0.0
  %566 = vadd.xlane.f32.xlu0 %v565
  %v567 = vpop.xlane.xlu0 %566
  %v568 = vmul.f32 %v567, %v53
  %v569 = vsub.f32 %v564, %v568
  %v570 = vmul.f32 %v569, %v569
  %v571 = vsel %vm371, %v570, 0.0
  %572 = vadd.xlane.f32.xlu0 %v571
  %v573 = vpop.xlane.xlu0 %572
  %v574 = vmul.f32 %v573, %v53
  %v575 = vadd.f32 %v574, 1e-05
  %v576 = vrsqrt.pop %v575
  %v577 = vmul.f32 %v569, %v576
  %v578 = vlaneseq
  %v579 = vshrl.u32 %v578, 7
  %v580 = vsub.s32 0, %v579
  %v581 = vrot.slane %v23, %v580
  %v582 = vmul.f32 %v577, %v581
  %v584 = vsel %vm46, %v582, 0
  %586 = vmatprep.subr.mxu0 0.0
  %587 = vmatpush1.msra.mxu0 %v40
  %588 = vmatprep.subr.mxu0 0.0
  %589 = vmatpush1.msra.mxu0 %v41
  %590 = vmatprep.subr.mxu0 0.0
  %591 = vmatpush1.msra.mxu0 %v42
  %592 = vmatprep.subr.mxu0 0.0
  %593 = vmatpush1.msra.mxu0 %v43
  %594 = vmatprep.subr.mxu0 0.0
  %595 = vmatpush1.msra.mxu0 0.0
  %596 = vmatprep.subr.mxu0 0.0
  %597 = vmatpush1.msra.mxu0 0.0
  %598 = vmatprep.subr.mxu0 0.0
  %599 = vmatpush1.msra.mxu0 0.0
  %600 = vmatprep.subr.mxu0 0.0
  %601 = vmatpush1.msra.mxu0 0.0
  %602 = vmatprep.subr.mxu0 0.0
  %603 = vmatpush1.msra.mxu0 0.0
  %604 = vmatprep.subr.mxu0 0.0
  %605 = vmatpush1.msra.mxu0 0.0
  %606 = vmatprep.subr.mxu0 0.0
  %607 = vmatpush1.msra.mxu0 0.0
  %608 = vmatprep.subr.mxu0 0.0
  %609 = vmatpush1.msra.mxu0 0.0
  %610 = vmatprep.subr.mxu0 0.0
  %611 = vmatpush1.msra.mxu0 0.0
  %612 = vmatprep.subr.mxu0 0.0
  %613 = vmatpush1.msra.mxu0 0.0
  %614 = vmatprep.subr.mxu0 0.0
  %615 = vmatpush1.msra.mxu0 0.0
  %616 = vmatprep.subr.mxu0 0.0
  %617 = vmatpush1.msra.mxu0 0.0
  %618 = vmatprep.subr.mxu0 0.0
  %619 = vmatpush1.msra.mxu0 0.0
  %620 = vmatprep.subr.mxu0 0.0
  %621 = vmatpush1.msra.mxu0 0.0
  %622 = vmatprep.subr.mxu0 0.0
  %623 = vmatpush1.msra.mxu0 0.0
  %624 = vmatprep.subr.mxu0 0.0
  %625 = vmatpush1.msra.mxu0 0.0
  %626 = vmatprep.subr.mxu0 0.0
  %627 = vmatpush1.msra.mxu0 0.0
  %628 = vmatprep.subr.mxu0 0.0
  %629 = vmatpush1.msra.mxu0 0.0
  %630 = vmatprep.subr.mxu0 0.0
  %631 = vmatpush1.msra.mxu0 0.0
  %632 = vmatprep.subr.mxu0 0.0
  %633 = vmatpush1.msra.mxu0 0.0
  %634 = vmatprep.subr.mxu0 0.0
  %635 = vmatpush1.msra.mxu0 0.0
  %636 = vmatprep.subr.mxu0 0.0
  %637 = vmatpush1.msra.mxu0 0.0
  %638 = vmatprep.subr.mxu0 0.0
  %639 = vmatpush1.msra.mxu0 0.0
  %640 = vmatprep.subr.mxu0 0.0
  %641 = vmatpush1.msra.mxu0 0.0
  %642 = vmatprep.subr.mxu0 0.0
  %643 = vmatpush1.msra.mxu0 0.0
  %644 = vmatprep.subr.mxu0 0.0
  %645 = vmatpush1.msra.mxu0 0.0
  %646 = vmatprep.subr.mxu0 0.0
  %647 = vmatpush1.msra.mxu0 0.0
  %648 = vmatprep.subr.mxu0 0.0
  %649 = vmatpush1.msra.mxu0 0.0
  %650 = vmatprep.mubr.f32.mxu0 0.0
  %651 = vmatmul.mubr.f32.gmra.mrb[0].mxu0 %v584
  %v652 = vpop.f32.mrb[0].mxu0
  %v653 = vadd.f32 0.0, %v652
  %v654 = vpop.f32.mrb[0].mxu0
  %655 = vdwg.mxu0
  %v657 = vrot.slane %v653, 1
  %658 = vrot.lane.b32.xlu0 %v657, 64
  %v659 = vpop.permute.xlu0 %658
  %v661 = vsel %vm490, %v653, %v659
  %662 = vst [vmem:[%s5] sm:$0x1] %v661
  // Predicated region
  $region22: #{causal_gdm_forward.1} parent=0 // pred_check
    _
  $region23: #{causal_gdm_forward.1} parent=0 // pred_check_branch
    %664 = sbr.rel (0) target = $region25
  $region24: #{causal_gdm_forward.1} parent=0 // pred_region
    _
  $region25: #{causal_gdm_forward.1} parent=0 // pred_fallthru
    _
  // Predicated region
  $region26: #{causal_gdm_forward.1} parent=0 // pred_check
    _
  $region27: #{causal_gdm_forward.1} parent=0 // pred_check_branch
    %666 = sbr.rel (0) target = $region29
  $region28: #{causal_gdm_forward.1} parent=0 // pred_region
    _
  $region29: #{causal_gdm_forward.1} parent=0 // pred_fallthru
    _

</llo_original>
